<compile_context>
chip_gen: v7x
topology: tpu7x:2x2x1
jax: 0.10.0
libtpu: 0.0.40
codegen_flags: <defaults>
</compile_context>

<pallas_src>
import math
import functools

import numpy as np
import jax
import jax.numpy as jnp
from jax.experimental import pallas as pl
from jax.experimental.pallas import tpu as pltpu


def make_svls_weights(ksize: int = 3, sigma: float = 1.0) -> np.ndarray:
    """Effective (normalized, sums to 1) SVLS depthwise-conv weights.

    Faithful to get_gaussian_kernel_2d + get_svls_filter_2d:
      g           : normalized Gaussian
      g[c, c]    <- 1 - g[c, c] + 1e-16
      svls_kernel = g / neighbors_sum;  forward divides by svls_kernel.sum()
    => effective weights = g / g.sum()   (the /neighbors_sum cancels exactly).
    """
    mean = (ksize - 1) / 2.0
    var = float(sigma) ** 2.0
    coords = np.arange(ksize, dtype=np.float64)
    xg, yg = np.meshgrid(coords, coords)  # xg varies along columns (matches torch)
    g = (1.0 / (2.0 * math.pi * var + 1e-16)) * np.exp(
        -((xg - mean) ** 2 + (yg - mean) ** 2) / (2.0 * var + 1e-16))
    g = g / g.sum()
    c = ksize // 2
    g[c, c] = 1.0 - g[c, c] + 1e-16  # center <- neighbor mass
    return (g / g.sum()).astype(np.float32)


def _svls_filter_kernel(x_ref, o_ref, *, kweights, ksize):
    # x_ref / o_ref: (1, 1, H, W) blocks -- one (image, channel) plane per grid step.
    p = ksize // 2
    x = x_ref[0, 0].astype(jnp.float32)  # (H, W), accumulate in f32
    H, W = x.shape

    # Replicate padding built in VMEM: pad lanes (W) first, then sublanes (H).
    xw = jnp.concatenate([x[:, :1]] * p + [x] + [x[:, W - 1:]] * p, axis=1)
    xp = jnp.concatenate([xw[:1, :]] * p + [xw] + [xw[H - 1:, :]] * p, axis=0)

    # ksize x ksize depthwise cross-correlation with compile-time scalar weights.
    acc = kweights[p][p] * x  # center tap is just the unpadded plane
    for dh in range(ksize):
        for dw in range(ksize):
            if dh == p and dw == p:
                continue
            acc = acc + kweights[dh][dw] * xp[dh:dh + H, dw:dw + W]

    o_ref[0, 0] = acc.astype(o_ref.dtype)


def svls_filter_2d(x, *, ksize: int = 3, sigma: float = 1.0):
    """JAX/Pallas equivalent of get_svls_filter_2d(ksize, sigma, channels).forward(x).

    x: (N, C, H, W) float tensor (NCHW, like PyTorch).  Returns same shape/dtype.
    """
    N, C, H, W = x.shape
    kw = make_svls_weights(ksize=ksize, sigma=sigma)
    kweights = tuple(tuple(float(kw[i, j]) for j in range(ksize)) for i in range(ksize))

    kernel = functools.partial(_svls_filter_kernel, kweights=kweights, ksize=ksize)

    return pl.pallas_call(
        kernel,
        out_shape=jax.ShapeDtypeStruct((N, C, H, W), x.dtype),
        grid_spec=pltpu.PrefetchScalarGridSpec(
            num_scalar_prefetch=0,
            grid=(N, C),
            in_specs=[pl.BlockSpec((1, 1, H, W), lambda n, c: (n, c, 0, 0))],
            out_specs=pl.BlockSpec((1, 1, H, W), lambda n, c: (n, c, 0, 0)),
        ),
        compiler_params=pltpu.CompilerParams(
            dimension_semantics=("parallel", "parallel"),
            vmem_limit_bytes=48 * 1024 * 1024,
        ),
    )(x)


def _reference(x, *, ksize: int = 3, sigma: float = 1.0):
    """Pure-JAX reference of the same forward (for the in-script correctness check)."""
    p = ksize // 2
    kw = jnp.asarray(make_svls_weights(ksize=ksize, sigma=sigma))
    N, C, H, W = x.shape
    xp = jnp.pad(x.astype(jnp.float32), ((0, 0), (0, 0), (p, p), (p, p)), mode="edge")
    out = jnp.zeros((N, C, H, W), jnp.float32)
    for i in range(ksize):
        for j in range(ksize):
            out = out + kw[i, j] * xp[:, :, i:i + H, j:j + W]
    return out.astype(x.dtype)


if __name__ == "__main__":
    key = jax.random.PRNGKey(0)
    N, C, H, W = 2, 4, 16, 16
    x = jax.random.normal(key, (N, C, H, W), dtype=jnp.float32)  # NCHW like PyTorch

    y = svls_filter_2d(x, ksize=3, sigma=1.0)
    y = jax.block_until_ready(y)

    ref = jax.block_until_ready(_reference(x, ksize=3, sigma=1.0))
    assert y.shape == (N, C, H, W) and y.dtype == x.dtype
    assert np.allclose(np.asarray(y), np.asarray(ref), rtol=1e-5, atol=1e-5), (
        float(jnp.max(jnp.abs(y - ref))))

    print("KERNEL_OK")
</pallas_src>

<mosaic_0001>
module attributes {stable_mosaic.version = 11 : i64} {
  func.func @_svls_filter_kernel(%arg0: i32, %arg1: i32, %arg2: memref<1x1x16x16xf32, #tpu.memory_space<vmem>>, %arg3: memref<1x1x16x16xf32, #tpu.memory_space<vmem>>) attributes {dimension_semantics = [#tpu.dimension_semantics<parallel>, #tpu.dimension_semantics<parallel>], iteration_bounds = array<i64: 2, 4>, scalar_prefetch = 0 : i64, scratch_operands = 0 : i64, tpu.core_type = #tpu.core_type<tc>, window_params = [{transform_indices = @transform_0, window_bounds = array<i64: 1, 1, 16, 16>}, {transform_indices = @transform_1, window_bounds = array<i64: 1, 1, 16, 16>}]} {
    %c0 = arith.constant 0 : index
    %c0_0 = arith.constant 0 : index
    %c0_1 = arith.constant 0 : index
    %c0_2 = arith.constant 0 : index
    %0 = vector.load %arg2[%c0, %c0_0, %c0_1, %c0_2] : memref<1x1x16x16xf32, #tpu.memory_space<vmem>>, vector<1x1x16x16xf32>
    %1 = vector.shape_cast %0 : vector<1x1x16x16xf32> to vector<16x16xf32>
    %2 = vector.extract_strided_slice %1 {offsets = [0, 0], sizes = [16, 1], strides = [1, 1]} : vector<16x16xf32> to vector<16x1xf32>
    %3 = vector.extract_strided_slice %1 {offsets = [0, 15], sizes = [16, 1], strides = [1, 1]} : vector<16x16xf32> to vector<16x1xf32>
    %4 = tpu.concatenate %2, %1, %3 in 1 : vector<16x1xf32>, vector<16x16xf32>, vector<16x1xf32> -> vector<16x18xf32>
    %5 = vector.extract_strided_slice %4 {offsets = [0, 0], sizes = [1, 18], strides = [1, 1]} : vector<16x18xf32> to vector<1x18xf32>
    %6 = vector.extract_strided_slice %4 {offsets = [15, 0], sizes = [1, 18], strides = [1, 1]} : vector<16x18xf32> to vector<1x18xf32>
    %7 = tpu.concatenate %5, %4, %6 in 0 : vector<1x18xf32>, vector<16x18xf32>, vector<1x18xf32> -> vector<18x18xf32>
    %cst = arith.constant 5.000000e-01 : f32
    %8 = vector.broadcast %cst : f32 to vector<16x16xf32>
    %9 = arith.mulf %8, %1 : vector<16x16xf32>
    %10 = vector.extract_strided_slice %7 {offsets = [0, 0], sizes = [16, 16], strides = [1, 1]} : vector<18x18xf32> to vector<16x16xf32>
    %cst_3 = arith.constant 0.0471925847 : f32
    %11 = vector.broadcast %cst_3 : f32 to vector<16x16xf32>
    %12 = arith.mulf %11, %10 : vector<16x16xf32>
    %13 = arith.addf %9, %12 : vector<16x16xf32>
    %14 = vector.extract_strided_slice %7 {offsets = [0, 1], sizes = [16, 16], strides = [1, 1]} : vector<18x18xf32> to vector<16x16xf32>
    %cst_4 = arith.constant 0.077807419 : f32
    %15 = vector.broadcast %cst_4 : f32 to vector<16x16xf32>
    %16 = arith.mulf %15, %14 : vector<16x16xf32>
    %17 = arith.addf %13, %16 : vector<16x16xf32>
    %18 = vector.extract_strided_slice %7 {offsets = [0, 2], sizes = [16, 16], strides = [1, 1]} : vector<18x18xf32> to vector<16x16xf32>
    %cst_5 = arith.constant 0.0471925847 : f32
    %19 = vector.broadcast %cst_5 : f32 to vector<16x16xf32>
    %20 = arith.mulf %19, %18 : vector<16x16xf32>
    %21 = arith.addf %17, %20 : vector<16x16xf32>
    %22 = vector.extract_strided_slice %7 {offsets = [1, 0], sizes = [16, 16], strides = [1, 1]} : vector<18x18xf32> to vector<16x16xf32>
    %cst_6 = arith.constant 0.077807419 : f32
    %23 = vector.broadcast %cst_6 : f32 to vector<16x16xf32>
    %24 = arith.mulf %23, %22 : vector<16x16xf32>
    %25 = arith.addf %21, %24 : vector<16x16xf32>
    %26 = vector.extract_strided_slice %7 {offsets = [1, 2], sizes = [16, 16], strides = [1, 1]} : vector<18x18xf32> to vector<16x16xf32>
    %cst_7 = arith.constant 0.077807419 : f32
    %27 = vector.broadcast %cst_7 : f32 to vector<16x16xf32>
    %28 = arith.mulf %27, %26 : vector<16x16xf32>
    %29 = arith.addf %25, %28 : vector<16x16xf32>
    %30 = vector.extract_strided_slice %7 {offsets = [2, 0], sizes = [16, 16], strides = [1, 1]} : vector<18x18xf32> to vector<16x16xf32>
    %cst_8 = arith.constant 0.0471925847 : f32
    %31 = vector.broadcast %cst_8 : f32 to vector<16x16xf32>
    %32 = arith.mulf %31, %30 : vector<16x16xf32>
    %33 = arith.addf %29, %32 : vector<16x16xf32>
    %34 = vector.extract_strided_slice %7 {offsets = [2, 1], sizes = [16, 16], strides = [1, 1]} : vector<18x18xf32> to vector<16x16xf32>
    %cst_9 = arith.constant 0.077807419 : f32
    %35 = vector.broadcast %cst_9 : f32 to vector<16x16xf32>
    %36 = arith.mulf %35, %34 : vector<16x16xf32>
    %37 = arith.addf %33, %36 : vector<16x16xf32>
    %38 = vector.extract_strided_slice %7 {offsets = [2, 2], sizes = [16, 16], strides = [1, 1]} : vector<18x18xf32> to vector<16x16xf32>
    %cst_10 = arith.constant 0.0471925847 : f32
    %39 = vector.broadcast %cst_10 : f32 to vector<16x16xf32>
    %40 = arith.mulf %39, %38 : vector<16x16xf32>
    %41 = arith.addf %37, %40 : vector<16x16xf32>
    %c0_11 = arith.constant 0 : index
    %c0_12 = arith.constant 0 : index
    %c0_13 = arith.constant 0 : index
    %c0_14 = arith.constant 0 : index
    %42 = vector.load %arg3[%c0_11, %c0_12, %c0_13, %c0_14] : memref<1x1x16x16xf32, #tpu.memory_space<vmem>>, vector<1x1x16x16xf32>
    %43 = vector.shape_cast %42 : vector<1x1x16x16xf32> to vector<16x16xf32>
    %44 = vector.shape_cast %41 : vector<16x16xf32> to vector<1x1x16x16xf32>
    tpu.vector_store %arg3[%c0_11, %c0_12, %c0_13, %c0_14], %44 {strides = array<i32>} : memref<1x1x16x16xf32, #tpu.memory_space<vmem>>, vector<1x1x16x16xf32>,
    return
  }
  func.func @transform_0(%arg0: i32, %arg1: i32) -> (i32, i32, i32, i32) {
    %c0_i32 = arith.constant 0 : i32
    %c0_i32_0 = arith.constant 0 : i32
    %c0_i32_1 = arith.constant 0 : i32
    return %arg0, %arg1, %c0_i32, %c0_i32_0 : i32, i32, i32, i32
  }
  func.func @transform_1(%arg0: i32, %arg1: i32) -> (i32, i32, i32, i32) {
    %c0_i32 = arith.constant 0 : i32
    %c0_i32_0 = arith.constant 0 : i32
    %c0_i32_1 = arith.constant 0 : i32
    return %arg0, %arg1, %c0_i32, %c0_i32_0 : i32, i32, i32, i32
  }
}

</mosaic_0001>

<llo_original>
// kernel: tpu_custom_call.1
$region0: #{tpu_custom_call.1}
  #allocation0 [shape = 'u32[]', space=smem, size = 0x4, offset = 0x4, fixed_abs, tag = 'smem constant byte address 0x4 - core index']
  #allocation1 [shape = 'u32[144,128]{1,0:T(1,128)}', space=vmem, size = 0x12000, scoped, tag = 'internal scratch']
  %s0 = inlined_call_operand.hbm [shape: f32[2,4,16,16], index: 0, kind: input, shape index: {}]
  %s1 = inlined_call_operand.hbm [shape: f32[2,4,16,16], index: 1, kind: output, shape index: {}]
  %s2 = sld [smem:[#allocation0]]
  $region41: #{tpu_custom_call.1} parent=0
    _
  %s4 = ssub.s32 1, %s2
  %s5 = scalar_select 0, %s4, %s2
  $region1: #{tpu_custom_call.1} parent=0
    #allocation2 [shape = 'u8[16384]{0}', space=vmem, size = 0x4000, scoped, tag = 'input window, operand 0']
    #allocation3 [shape = 's32[2]{0}', space=sflag, size = 0x8, scoped, tag = 'scoped memory for tpu_custom_call.1']
    #allocation4 [shape = 's32[2]{0}', space=sflag, size = 0x8, scoped, tag = 'scoped memory for tpu_custom_call.1']
    #allocation5 [shape = 'u8[16384]{0}', space=vmem, size = 0x4000, scoped, tag = 'output window, operand 0']
    %6 = vsyncpa [#allocation3], 0
    %s7 = scalar_lea.sflag [#allocation3], 1
    %8 = vsyncpa %s7, 0
    %9 = vsyncpa [#allocation4], 0
    %s10 = scalar_lea.sflag [#allocation4], 1
    %11 = vsyncpa %s10, 0
    loop: start=0, step=1, limit=10
    $region2: #{tpu_custom_call.1} parent=1 // loop_pre_header
      _
    $region3: #{tpu_custom_call.1} parent=1 // loop_header
      %s13 = sphi 0, %s17
      %p14 = scmp.ge.s32.totalorder %s13, 10
      %s20 = sphi 0, %s32
      %s21 = sphi 0, %s28
      %s22 = sphi 0, %s20
      %s23 = sphi 0, %s21
      %s24 = sphi 0, %s22
      %s25 = sphi 0, %s23
      %s37 = sphi 0, %s39
      %s40 = sphi 0, %s37
      %s41 = sphi 0, %s40
      %s57 = sphi 0, %s41
      %s65 = sphi 0, %s67
      %s68 = sphi 0, %s65
      %s69 = sphi 0, %s68
      %s85 = sphi 0, %s69
    $region4: #{tpu_custom_call.1} parent=1 // loop_header_branch
      %16 = sbr.rel (%p14) target = $region8
    $region5: #{tpu_custom_call.1} parent=1 // loop_body
      %s18 = ssub.s32 %s13, 1
      %s19 = ssub.s32 %s13, 2
      %s26 = sadd.s32 1, %s21
      %p27 = scmp.ge.s32.totalorder %s26, 4
      %s28 = scalar_select %p27, 0, %s26
      %s29 = sadd.s32 1, %s20
      %s30 = scalar_select %p27, %s29, %s20
      %p31 = scmp.ge.s32.totalorder %s30, 2
      %s32 = scalar_select %p31, 0, %s30
      %s33 = ssub.s32 %s20, %s32
      %s34 = ssub.s32 %s21, %s28
      %s35 = sor.u32 %s33, %s34
      %p36 = scmp.eq.s32.totalorder %s35, 0
      %s38 = sadd.s32 %s37, 1
      %s39 = scalar_select %p36, %s37, %s38
      %p42 = pneg %p36
      %p43 = scmp.eq.s32.totalorder %s13, 7
      %p44 = por %p42, %p43
      %p45 = scmp.ne.s32.totalorder %s37, %s40
      %p46 = scmp.eq.s32.totalorder %s13, 0
      %p47 = por %p45, %p46
      %p48 = scmp.ne.s32.totalorder %s37, %s40
      %p49 = scmp.eq.s32.totalorder %s18, 7
      %p50 = por %p48, %p49
      %p51 = scmp.ne.s32.totalorder %s40, %s41
      %p52 = scmp.eq.s32.totalorder %s18, 0
      %p53 = por %p51, %p52
      %p54 = scmp.ne.s32.totalorder %s40, %s41
      %p55 = scmp.eq.s32.totalorder %s19, 7
      %p56 = por %p54, %p55
      %p58 = scmp.ne.s32.totalorder %s41, %s57
      %p59 = scmp.eq.s32.totalorder %s19, 0
      %p60 = por %p58, %p59
      %s61 = ssub.s32 %s20, %s32
      %s62 = ssub.s32 %s21, %s28
      %s63 = sor.u32 %s61, %s62
      %p64 = scmp.eq.s32.totalorder %s63, 0
      %s66 = sadd.s32 %s65, 1
      %s67 = scalar_select %p64, %s65, %s66
      %p70 = pneg %p64
      %p71 = scmp.eq.s32.totalorder %s13, 7
      %p72 = por %p70, %p71
      %p73 = scmp.ne.s32.totalorder %s65, %s68
      %p74 = scmp.eq.s32.totalorder %s13, 0
      %p75 = por %p73, %p74
      %p76 = scmp.ne.s32.totalorder %s65, %s68
      %p77 = scmp.eq.s32.totalorder %s18, 7
      %p78 = por %p76, %p77
      %p79 = scmp.ne.s32.totalorder %s68, %s69
      %p80 = scmp.eq.s32.totalorder %s18, 0
      %p81 = por %p79, %p80
      %p82 = scmp.ne.s32.totalorder %s68, %s69
      %p83 = scmp.eq.s32.totalorder %s19, 7
      %p84 = por %p82, %p83
      %p86 = scmp.ne.s32.totalorder %s69, %s85
      %p87 = scmp.eq.s32.totalorder %s19, 0
      %p88 = por %p86, %p87
      %p89 = scmp.le.s32.totalorder 1, %s13
      %p90 = scmp.lt.s32.totalorder %s13, 9
      %p91 = pnand %p89, %p90
      %p92 = pneg %p91
      // Predicated region
      $region9: #{tpu_custom_call.1} parent=5 // pred_check
        _
      $region10: #{tpu_custom_call.1} parent=5 // pred_check_branch
        %94 = sbr.rel (%p91) target = $region12
      $region11: #{tpu_custom_call.1} parent=5 // pred_region
        %s95 = ssub.s32 %s13, 1
      $region12: #{tpu_custom_call.1} parent=5 // pred_fallthru
        _
      %p96 = scmp.lt.s32.totalorder %s13, 8
      // Predicated region
      $region13: #{tpu_custom_call.1} parent=5 // pred_check
        %p97 = pneg %p96
      $region14: #{tpu_custom_call.1} parent=5 // pred_check_branch
        %99 = sbr.rel (%p97) target = $region16
      $region15: #{tpu_custom_call.1} parent=5 // pred_region
        // Predicated region
        $region17: #{tpu_custom_call.1} parent=15 // pred_check
          %p100 = pneg %p47
        $region18: #{tpu_custom_call.1} parent=15 // pred_check_branch
          %102 = sbr.rel (%p100) target = $region20
        $region19: #{tpu_custom_call.1} parent=15 // pred_region
          %s103 = sand.u32 %s37, 1
          %s104 = scalar_lea.sflag [#allocation3], %s103
          %s105 = sand.u32 %s37, 1
          %s106 = smul.addr %s105, 16
          %s107 = scalar_lea.vmem [#allocation2], %s106
          %s109 = ssub.s32 256, 256
          %110 = vsyncadd %s104, %s109
          %s111 = smul.addr %s21, 2
          %s112 = smul.addr %s20, 8
          %s113 = sadd.s32 %s111, %s112
          %s114 = smul.addr %s113, 128
          %s115 = scalar_lea.hbm %s0, %s114
          %s116 = sshll.u32 %s107, 4
          %s117 = int_to_ptr.vmem [resolvable:$true] %s116
          %122 = dma.hbm_to_vmem [thread:$0]  %s115, 256, %s117, %s104, 128, 128, 8
        $region20: #{tpu_custom_call.1} parent=15 // pred_fallthru
          _
      $region16: #{tpu_custom_call.1} parent=5 // pred_fallthru
        _
      %p123 = scmp.le.s32.totalorder 1, %s13
      %p124 = scmp.lt.s32.totalorder %s13, 9
      %p125 = pnand %p123, %p124
      %p126 = pneg %p125
      // Predicated region
      $region21: #{tpu_custom_call.1} parent=5 // pred_check
        _
      $region22: #{tpu_custom_call.1} parent=5 // pred_check_branch
        %128 = sbr.rel (%p125) target = $region24
      $region23: #{tpu_custom_call.1} parent=5 // pred_region
        %s129 = ssub.s32 %s13, 1
        %s130 = sand.u32 %s40, 1
        %s131 = scalar_lea.sflag [#allocation3], %s130
        %s132 = sand.u32 %s40, 1
        %s133 = smul.addr %s132, 16
        %s134 = scalar_lea.vmem [#allocation2], %s133
        // Predicated region
        $region25: #{tpu_custom_call.1} parent=23 // pred_check
          %p135 = pneg %p53
        $region26: #{tpu_custom_call.1} parent=23 // pred_check_branch
          %137 = sbr.rel (%p135) target = $region28
        $region27: #{tpu_custom_call.1} parent=23 // pred_region
          %138 = dma.done %s131, 256
        $region28: #{tpu_custom_call.1} parent=23 // pred_fallthru
          _
        %s139 = sand.u32 %s40, 1
        %s140 = scalar_lea.sflag [#allocation3], %s139
        %s141 = sand.u32 %s40, 1
        %s142 = smul.addr %s141, 16
        %s143 = scalar_lea.vmem [#allocation2], %s142
        %p144 = pneg %p53
        %p145 = pneg %p50
        %p146 = pneg %p81
        %p147 = pneg %p78
        %s148 = sand.u32 %s68, 1
        %s149 = scalar_lea.sflag [#allocation4], %s148
        %s150 = sand.u32 %s68, 1
        %s151 = smul.addr %s150, 16
        %s152 = scalar_lea.vmem [#allocation5], %s151
        %v153 = vld [vmem:[%s134] sm:$0xff]
        %v154 = vld [vmem:[%s134 + $0x8] sm:$0xff]
        %157 = vrot.lane.b32.xlu0 %v153, 1
        %v158 = vpop.permute.xlu0 %157
        %159 = vrot.lane.b32.xlu0 %v154, 1
        %v160 = vpop.permute.xlu0 %159
        %163 = vrot.lane.b32.xlu0 %v153, 2
        %v164 = vpop.permute.xlu0 %163
        %165 = vrot.lane.b32.xlu0 %v154, 2
        %v166 = vpop.permute.xlu0 %165
        %vm169 = vcmask 7168
        %v170 = vsel %vm169, %v153, %v158
        %v171 = vsel %vm169, %v154, %v160
        %vm172 = vcmask 138240
        %v173 = vsel %vm172, %v170, %v164
        %v174 = vsel %vm172, %v171, %v166
        %vm177 = vcmask 1040384
        %v178 = vrot.slane %v173, 7
        %v179 = vrot.slane %v174, 7
        %v180 = vsel %vm177, %v178, %v179
        %v184 = vrot.slane %v174, 6
        %v186 = vsel %vm177, %v173, %v178
        %v187 = vsel %vm177, %v179, %v184
        %v188 = vmul.f32 %v153, 0.5
        %v189 = vmul.f32 %v154, 0.5
        %v190 = vmul.f32 %v186, 0.047192585
        %v191 = vmul.f32 %v180, 0.047192585
        %v192 = vadd.f32 %v188, %v190
        %v193 = vadd.f32 %v189, %v191
        %v194 = vmul.f32 %v186, 0.07780742
        %v195 = vmul.f32 %v180, 0.07780742
        %198 = vrot.lane.b32.xlu0 %v194, 127
        %v199 = vpop.permute.xlu0 %198
        %200 = vrot.lane.b32.xlu0 %v195, 127
        %v201 = vpop.permute.xlu0 %200
        %v204 = vadd.f32 %v192, %v199
        %v205 = vadd.f32 %v193, %v201
        %208 = vrot.lane.b32.xlu0 %v190, 126
        %v209 = vpop.permute.xlu0 %208
        %210 = vrot.lane.b32.xlu0 %v191, 126
        %v211 = vpop.permute.xlu0 %210
        %v214 = vadd.f32 %v204, %v209
        %v215 = vadd.f32 %v205, %v211
        %v216 = vmul.f32 %v187, 0.07780742
        %vm218 = vcmask 1046528
        %v219 = vrot.slane %v194, 1
        %v220 = vrot.slane %v195, 1
        %v221 = vsel %vm218, %v219, %v220
        %v222 = vrot.slane %v216, 1
        %v223 = vsel %vm218, %v220, %v222
        %v226 = vadd.f32 %v214, %v221
        %v227 = vadd.f32 %v215, %v223
        %228 = vrot.lane.b32.xlu0 %v221, 126
        %v229 = vpop.permute.xlu0 %228
        %230 = vrot.lane.b32.xlu0 %v223, 126
        %v231 = vpop.permute.xlu0 %230
        %v234 = vadd.f32 %v226, %v229
        %v235 = vadd.f32 %v227, %v231
        %v236 = vmul.f32 %v187, 0.047192585
        %vm238 = vcmask 1045504
        %v239 = vrot.slane %v190, 2
        %v240 = vrot.slane %v191, 2
        %v241 = vsel %vm238, %v239, %v240
        %v242 = vrot.slane %v236, 2
        %v243 = vsel %vm238, %v240, %v242
        %v246 = vadd.f32 %v234, %v241
        %v247 = vadd.f32 %v235, %v243
        %v248 = vrot.slane %v194, 2
        %v249 = vrot.slane %v195, 2
        %v250 = vsel %vm238, %v248, %v249
        %v251 = vrot.slane %v216, 2
        %v252 = vsel %vm238, %v249, %v251
        %253 = vrot.lane.b32.xlu0 %v250, 127
        %v254 = vpop.permute.xlu0 %253
        %255 = vrot.lane.b32.xlu0 %v252, 127
        %v256 = vpop.permute.xlu0 %255
        %v259 = vadd.f32 %v246, %v254
        %v260 = vadd.f32 %v247, %v256
        %261 = vrot.lane.b32.xlu0 %v241, 126
        %v262 = vpop.permute.xlu0 %261
        %263 = vrot.lane.b32.xlu0 %v243, 126
        %v264 = vpop.permute.xlu0 %263
        %v267 = vadd.f32 %v259, %v262
        %v268 = vadd.f32 %v260, %v264
        %vm269 = vcmask 130048
        %270 = vst.msk [vmem:[%s152] sm:$0xff] %vm269, %v267
        %271 = vst.msk [vmem:[%s152 + $0x8] sm:$0xff] %vm269, %v268
        %s272 = sand.u32 %s68, 1
        %s273 = scalar_lea.sflag [#allocation4], %s272
        %s274 = sand.u32 %s68, 1
        %s275 = smul.addr %s274, 16
        %s276 = scalar_lea.vmem [#allocation5], %s275
        // Predicated region
        $region29: #{tpu_custom_call.1} parent=23 // pred_check
          %p277 = pneg %p78
        $region30: #{tpu_custom_call.1} parent=23 // pred_check_branch
          %279 = sbr.rel (%p277) target = $region32
        $region31: #{tpu_custom_call.1} parent=23 // pred_region
          %s281 = ssub.s32 256, 256
          %282 = vsyncadd %s273, %s281
          %s283 = smul.addr %s23, 2
          %s284 = smul.addr %s22, 8
          %s285 = sadd.s32 %s283, %s284
          %s286 = smul.addr %s285, 128
          %s287 = scalar_lea.hbm %s1, %s286
          %s288 = sshll.u32 %s276, 4
          %s289 = int_to_ptr.vmem [resolvable:$true] %s288
          %294 = dma.vmem_to_hbm [thread:$0]  %s289, 256, %s287, %s273, 128, 128, 8
        $region32: #{tpu_custom_call.1} parent=23 // pred_fallthru
          _
      $region24: #{tpu_custom_call.1} parent=5 // pred_fallthru
        _
      %p295 = scmp.le.s32.totalorder 2, %s13
      // Predicated region
      $region33: #{tpu_custom_call.1} parent=5 // pred_check
        %p296 = pneg %p295
      $region34: #{tpu_custom_call.1} parent=5 // pred_check_branch
        %298 = sbr.rel (%p296) target = $region36
      $region35: #{tpu_custom_call.1} parent=5 // pred_region
        %s299 = ssub.s32 %s13, 2
        // Predicated region
        $region37: #{tpu_custom_call.1} parent=35 // pred_check
          %p300 = pneg %p84
        $region38: #{tpu_custom_call.1} parent=35 // pred_check_branch
          %302 = sbr.rel (%p300) target = $region40
        $region39: #{tpu_custom_call.1} parent=35 // pred_region
          %s303 = sand.u32 %s69, 1
          %s304 = scalar_lea.sflag [#allocation4], %s303
          %s305 = sand.u32 %s69, 1
          %s306 = smul.addr %s305, 16
          %s307 = scalar_lea.vmem [#allocation5], %s306
          %308 = dma.done %s304, 256
        $region40: #{tpu_custom_call.1} parent=35 // pred_fallthru
          _
      $region36: #{tpu_custom_call.1} parent=5 // pred_fallthru
        _
    $region6: #{tpu_custom_call.1} parent=1 // loop_footer
      %s17 = sadd.s32 1, %s13
    $region7: #{tpu_custom_call.1} parent=1 // loop_footer_branch
      %12 = sbr.rel target = $region3
    $region8: #{tpu_custom_call.1} parent=1 // loop_exit
      _
    %309 = vsyncpa [#allocation3], 1
    %s310 = scalar_lea.sflag [#allocation3], 1
    %311 = vsyncpa %s310, 1
    %312 = vsyncpa [#allocation4], 1
    %s313 = scalar_lea.sflag [#allocation4], 1
    %314 = vsyncpa %s313, 1

</llo_original>
